<compile_context>
chip_gen: v6e
topology: v6e:2x2x1
jax: 0.10.0
libtpu: 0.0.40
codegen_flags: <defaults>
</compile_context>

<pallas_src>
import jax
import jax.numpy as jnp
import numpy as np
from jax.experimental import pallas as pl
from jax.experimental.pallas import tpu as pltpu


def _attention_kernel(dec_ref, enc_ref, mask_ref,
                      w_enc_ref, b_enc_ref, w_dec_ref, w_attn_ref,
                      ctx_ref, alpha_ref):
    Bb, T, E = enc_ref.shape
    A = w_enc_ref.shape[1]

    enc = enc_ref[...]                                     # (Bb, T, E)

    # --- encoder projection: one MXU matmul over all Bb*T rows ---------------
    enc2d = enc.reshape(Bb * T, E)
    enc_contrib = jnp.dot(enc2d, w_enc_ref[...],
                          preferred_element_type=jnp.float32) + b_enc_ref[...]
    enc_contrib = enc_contrib.reshape(Bb, T, A)            # (Bb, T, A) f32

    # --- decoder projection: (Bb, D) @ (D, A) --------------------------------
    dec_contrib = jnp.dot(dec_ref[...], w_dec_ref[...],
                          preferred_element_type=jnp.float32)   # (Bb, A) f32

    pre_attn = jnp.tanh(enc_contrib + dec_contrib[:, None, :])  # (Bb, T, A) f32

    # --- energy: VPU multiply + lane reduce (no width-1 matmul / relayout) ---
    w_row = w_attn_ref[...].reshape(1, 1, A).astype(jnp.float32)
    energy = jnp.sum(pre_attn * w_row, axis=-1)            # (Bb, T) f32

    # --- fused masked softmax (== softmax -> mask -> renorm) -----------------
    msk = mask_ref[...].astype(jnp.float32)                # (Bb, T)
    m = jnp.max(energy, axis=-1, keepdims=True)
    e = jnp.exp(energy - m) * msk
    alpha = e / jnp.sum(e, axis=-1, keepdims=True)         # (Bb, T) f32

    # --- context vector: sum_t alpha[b,t] * enc[b,t,:] ------------------------
    ctx = jnp.sum(alpha[:, :, None] * enc.astype(jnp.float32), axis=1)  # (Bb, E)

    ctx_ref[...] = ctx.astype(ctx_ref.dtype)
    alpha_ref[...] = alpha.astype(alpha_ref.dtype)


def _pick_batch_block(B, T, E, dtype_bytes, vmem_budget_bytes=4 << 20):
    """Largest batch block that (a) divides B, (b) is the whole batch or a
    multiple of 8 (dense sublanes for the output stores), and (c) keeps the
    double-buffered enc block comfortably inside scoped VMEM on all TPU gens
    (conservative budget so the same choice fits v7x's 64 MiB VMEM)."""
    cands = [b for b in range(1, B + 1)
             if B % b == 0 and (b == B or b % 8 == 0)]
    best = cands[0]
    for b in cands:
        if 2 * b * T * E * dtype_bytes <= vmem_budget_bytes:
            best = b
    return best


def attention_forward(dec_state, enc_states, mask, params, compute_dtype=None):
    """Pallas implementation of Attention.forward.

    params: dict with PyTorch Linear layouts
      'w_enc'  : (attn_dim, enc_dim)
      'b_enc'  : (attn_dim,)
      'w_dec'  : (attn_dim, dec_dim)
      'w_attn' : (1, attn_dim)
    compute_dtype: optional dtype for the MXU matmul inputs (e.g. jnp.bfloat16
      on v6e/v7x). Accumulation / tanh / softmax stay in float32.
    Returns (context_vector (B, enc_dim), alpha (B, T)).
    """
    B, T, E = enc_states.shape
    D = dec_state.shape[1]
    A = params["w_enc"].shape[0]
    out_dtype = enc_states.dtype

    mm_dtype = enc_states.dtype if compute_dtype is None else compute_dtype

    # Pre-transpose weights to (in, out) so the kernel does x @ W.
    w_enc_t = jnp.asarray(params["w_enc"]).T.astype(mm_dtype)        # (E, A)
    b_enc = jnp.asarray(params["b_enc"]).reshape(1, A).astype(jnp.float32)
    w_dec_t = jnp.asarray(params["w_dec"]).T.astype(mm_dtype)        # (D, A)
    w_attn_row = jnp.asarray(params["w_attn"]).reshape(1, A).astype(jnp.float32)

    enc_in = enc_states.astype(mm_dtype)
    dec_in = dec_state.astype(mm_dtype)

    Bb = _pick_batch_block(B, T, E, jnp.dtype(mm_dtype).itemsize)
    grid = (B // Bb,)

    out_shapes = (
        jax.ShapeDtypeStruct((B, E), out_dtype),
        jax.ShapeDtypeStruct((B, T), out_dtype),
    )

    grid_spec = pltpu.PrefetchScalarGridSpec(
        num_scalar_prefetch=0,
        grid=grid,
        in_specs=[
            pl.BlockSpec((Bb, D), lambda g: (g, 0)),        # dec_state block
            pl.BlockSpec((Bb, T, E), lambda g: (g, 0, 0)),  # enc_states block
            pl.BlockSpec((Bb, T), lambda g: (g, 0)),        # mask block
            pl.BlockSpec((E, A), lambda g: (0, 0)),         # W_enc^T (invariant)
            pl.BlockSpec((1, A), lambda g: (0, 0)),         # b_enc   (invariant)
            pl.BlockSpec((D, A), lambda g: (0, 0)),         # W_dec^T (invariant)
            pl.BlockSpec((1, A), lambda g: (0, 0)),         # w_attn row (invariant)
        ],
        out_specs=[
            pl.BlockSpec((Bb, E), lambda g: (g, 0)),        # context block
            pl.BlockSpec((Bb, T), lambda g: (g, 0)),        # alpha block
        ],
    )

    ctx, alpha = pl.pallas_call(
        _attention_kernel,
        out_shape=out_shapes,
        grid_spec=grid_spec,
        compiler_params=pltpu.CompilerParams(
            dimension_semantics=("parallel",)),
    )(dec_in, enc_in, mask, w_enc_t, b_enc, w_dec_t, w_attn_row)
    return ctx, alpha


def _reference_forward(dec_state, enc_states, mask, params):
    """Pure-JAX reference mirroring the PyTorch forward exactly."""
    w_enc, b_enc = params["w_enc"], params["b_enc"]
    w_dec, w_attn = params["w_dec"], params["w_attn"]
    dec_contrib = dec_state @ w_dec.T                         # (B, A)
    enc_contrib = enc_states @ w_enc.T + b_enc                # (B, T, A)
    pre_attn = jnp.tanh(enc_contrib + dec_contrib[:, None, :])
    energy = (pre_attn @ w_attn.T)[..., 0]                    # (B, T)
    alpha = jax.nn.softmax(energy, axis=1)
    alpha = alpha * mask
    alpha = alpha / jnp.sum(alpha, axis=1, keepdims=True)
    ctx = jnp.einsum("bt,bte->be", alpha, enc_states)
    return ctx, alpha


if __name__ == "__main__":
    # Small shapes consistent with the module.
    B, T, enc_dim, dec_dim = 2, 8, 32, 32
    attn_dim = dec_dim  # attn_dim defaults to dec_dim

    key = jax.random.PRNGKey(0)
    k1, k2, k3, k4, k5, k6 = jax.random.split(key, 6)

    # Deterministic parameter init matching init_weights(): U(-0.08, 0.08), bias 0.
    params = {
        "w_enc": jax.random.uniform(k1, (attn_dim, enc_dim),
                                    minval=-0.08, maxval=0.08, dtype=jnp.float32),
        "b_enc": jnp.zeros((attn_dim,), dtype=jnp.float32),
        "w_dec": jax.random.uniform(k2, (attn_dim, dec_dim),
                                    minval=-0.08, maxval=0.08, dtype=jnp.float32),
        "w_attn": jax.random.uniform(k3, (1, attn_dim),
                                     minval=-0.08, maxval=0.08, dtype=jnp.float32),
    }

    dec_state = jax.random.normal(k4, (B, dec_dim), dtype=jnp.float32)
    enc_states = jax.random.normal(k5, (B, T, enc_dim), dtype=jnp.float32)
    # Binary padding mask: first batch fully valid, second has 2 padded steps.
    mask = jnp.ones((B, T), dtype=jnp.float32)
    mask = mask.at[1, T - 2:].set(0.0)

    ctx, alpha = attention_forward(dec_state, enc_states, mask, params)
    jax.block_until_ready((ctx, alpha))

    ctx_ref, alpha_ref = _reference_forward(dec_state, enc_states, mask, params)
    assert np.allclose(np.asarray(ctx), np.asarray(ctx_ref), atol=1e-5), "context mismatch"
    assert np.allclose(np.asarray(alpha), np.asarray(alpha_ref), atol=1e-5), "alpha mismatch"
    assert np.allclose(np.asarray(alpha).sum(axis=1), 1.0, atol=1e-5)

    print("KERNEL_OK")
</pallas_src>

<mosaic_0001>
module attributes {stable_mosaic.version = 11 : i64} {
  func.func @_attention_kernel(%arg0: i32, %arg1: memref<2x32xf32, #tpu.memory_space<vmem>>, %arg2: memref<2x8x32xf32, #tpu.memory_space<vmem>>, %arg3: memref<2x8xf32, #tpu.memory_space<vmem>>, %arg4: memref<32x32xf32, #tpu.memory_space<vmem>>, %arg5: memref<1x32xf32, #tpu.memory_space<vmem>>, %arg6: memref<32x32xf32, #tpu.memory_space<vmem>>, %arg7: memref<1x32xf32, #tpu.memory_space<vmem>>, %arg8: memref<2x32xf32, #tpu.memory_space<vmem>>, %arg9: memref<2x8xf32, #tpu.memory_space<vmem>>) attributes {dimension_semantics = [#tpu.dimension_semantics<parallel>], iteration_bounds = array<i64: 1>, scalar_prefetch = 0 : i64, scratch_operands = 0 : i64, tpu.core_type = #tpu.core_type<tc>, window_params = [{transform_indices = @transform_0, window_bounds = array<i64: 2, 32>}, {transform_indices = @transform_1, window_bounds = array<i64: 2, 8, 32>}, {transform_indices = @transform_2, window_bounds = array<i64: 2, 8>}, {pipeline_mode = #tpu.pipeline_mode<synchronous>, transform_indices = @transform_3, window_bounds = array<i64: 32, 32>}, {pipeline_mode = #tpu.pipeline_mode<synchronous>, transform_indices = @transform_4, window_bounds = array<i64: 1, 32>}, {pipeline_mode = #tpu.pipeline_mode<synchronous>, transform_indices = @transform_5, window_bounds = array<i64: 32, 32>}, {pipeline_mode = #tpu.pipeline_mode<synchronous>, transform_indices = @transform_6, window_bounds = array<i64: 1, 32>}, {transform_indices = @transform_7, window_bounds = array<i64: 2, 32>}, {transform_indices = @transform_8, window_bounds = array<i64: 2, 8>}]} {
    %c0 = arith.constant 0 : index
    %c0_0 = arith.constant 0 : index
    %c0_1 = arith.constant 0 : index
    %0 = vector.load %arg2[%c0, %c0_0, %c0_1] : memref<2x8x32xf32, #tpu.memory_space<vmem>>, vector<2x8x32xf32>
    %1 = vector.shape_cast %0 : vector<2x8x32xf32> to vector<16x32xf32>
    %c0_2 = arith.constant 0 : index
    %c0_3 = arith.constant 0 : index
    %2 = vector.load %arg4[%c0_2, %c0_3] : memref<32x32xf32, #tpu.memory_space<vmem>>, vector<32x32xf32>
    %cst = arith.constant dense<0.000000e+00> : vector<16x32xf32>
    %3 = tpu.matmul %1, %2, %cst {dimension_numbers = #tpu.dot_dimension_numbers<[1], [0], [0], [1], [0, 0, 1, 1], [], []>} : vector<16x32xf32>, vector<32x32xf32>, vector<16x32xf32> -> vector<16x32xf32>
    %c0_4 = arith.constant 0 : index
    %c0_5 = arith.constant 0 : index
    %4 = vector.load %arg5[%c0_4, %c0_5] : memref<1x32xf32, #tpu.memory_space<vmem>>, vector<1x32xf32>
    %5 = vector.broadcast %4 : vector<1x32xf32> to vector<16x32xf32>
    %6 = arith.addf %3, %5 : vector<16x32xf32>
    %7 = vector.shape_cast %6 : vector<16x32xf32> to vector<2x8x32xf32>
    %c0_6 = arith.constant 0 : index
    %c0_7 = arith.constant 0 : index
    %8 = vector.load %arg1[%c0_6, %c0_7] : memref<2x32xf32, #tpu.memory_space<vmem>>, vector<2x32xf32>
    %c0_8 = arith.constant 0 : index
    %c0_9 = arith.constant 0 : index
    %9 = vector.load %arg6[%c0_8, %c0_9] : memref<32x32xf32, #tpu.memory_space<vmem>>, vector<32x32xf32>
    %cst_10 = arith.constant dense<0.000000e+00> : vector<2x32xf32>
    %10 = tpu.matmul %8, %9, %cst_10 {dimension_numbers = #tpu.dot_dimension_numbers<[1], [0], [0], [1], [0, 0, 1, 1], [], []>} : vector<2x32xf32>, vector<32x32xf32>, vector<2x32xf32> -> vector<2x32xf32>
    %11 = vector.shape_cast %10 : vector<2x32xf32> to vector<2x1x32xf32>
    %12 = vector.broadcast %11 : vector<2x1x32xf32> to vector<2x8x32xf32>
    %13 = arith.addf %7, %12 : vector<2x8x32xf32>
    %14 = math.tanh %13 : vector<2x8x32xf32>
    %c0_11 = arith.constant 0 : index
    %c0_12 = arith.constant 0 : index
    %15 = vector.load %arg7[%c0_11, %c0_12] : memref<1x32xf32, #tpu.memory_space<vmem>>, vector<1x32xf32>
    %16 = vector.shape_cast %15 : vector<1x32xf32> to vector<1x1x32xf32>
    %17 = vector.broadcast %16 : vector<1x1x32xf32> to vector<2x8x32xf32>
    %18 = arith.mulf %14, %17 : vector<2x8x32xf32>
    %cst_13 = arith.constant dense<0.000000e+00> : vector<2x8xf32>
    %19 = vector.multi_reduction <add>, %18, %cst_13 [2] : vector<2x8x32xf32> to vector<2x8xf32>
    %c0_14 = arith.constant 0 : index
    %c0_15 = arith.constant 0 : index
    %20 = vector.load %arg3[%c0_14, %c0_15] : memref<2x8xf32, #tpu.memory_space<vmem>>, vector<2x8xf32>
    %cst_16 = arith.constant dense<0xFF800000> : vector<2xf32>
    %21 = vector.multi_reduction <maximumf>, %19, %cst_16 [1] : vector<2x8xf32> to vector<2xf32>
    %22 = vector.shape_cast %21 : vector<2xf32> to vector<2x1xf32>
    %23 = vector.broadcast %22 : vector<2x1xf32> to vector<2x8xf32>
    %24 = arith.subf %19, %23 : vector<2x8xf32>
    %25 = math.exp %24 : vector<2x8xf32>
    %26 = arith.mulf %25, %20 : vector<2x8xf32>
    %cst_17 = arith.constant dense<0.000000e+00> : vector<2xf32>
    %27 = vector.multi_reduction <add>, %26, %cst_17 [1] : vector<2x8xf32> to vector<2xf32>
    %28 = vector.shape_cast %27 : vector<2xf32> to vector<2x1xf32>
    %29 = vector.broadcast %28 : vector<2x1xf32> to vector<2x8xf32>
    %30 = arith.divf %26, %29 : vector<2x8xf32>
    %31 = vector.shape_cast %30 : vector<2x8xf32> to vector<2x8x1xf32>
    %32 = vector.broadcast %31 : vector<2x8x1xf32> to vector<2x8x32xf32>
    %33 = arith.mulf %32, %0 : vector<2x8x32xf32>
    %cst_18 = arith.constant dense<0.000000e+00> : vector<2x32xf32>
    %34 = vector.multi_reduction <add>, %33, %cst_18 [1] : vector<2x8x32xf32> to vector<2x32xf32>
    %c0_19 = arith.constant 0 : index
    %c0_20 = arith.constant 0 : index
    %35 = vector.load %arg8[%c0_19, %c0_20] : memref<2x32xf32, #tpu.memory_space<vmem>>, vector<2x32xf32>
    tpu.vector_store %arg8[%c0_19, %c0_20], %34 {strides = array<i32>} : memref<2x32xf32, #tpu.memory_space<vmem>>, vector<2x32xf32>,
    %c0_21 = arith.constant 0 : index
    %c0_22 = arith.constant 0 : index
    %36 = vector.load %arg9[%c0_21, %c0_22] : memref<2x8xf32, #tpu.memory_space<vmem>>, vector<2x8xf32>
    tpu.vector_store %arg9[%c0_21, %c0_22], %30 {strides = array<i32>} : memref<2x8xf32, #tpu.memory_space<vmem>>, vector<2x8xf32>,
    return
  }
  func.func @transform_0(%arg0: i32) -> (i32, i32) {
    %c0_i32 = arith.constant 0 : i32
    %c0_i32_0 = arith.constant 0 : i32
    return %arg0, %c0_i32 : i32, i32
  }
  func.func @transform_1(%arg0: i32) -> (i32, i32, i32) {
    %c0_i32 = arith.constant 0 : i32
    %c0_i32_0 = arith.constant 0 : i32
    %c0_i32_1 = arith.constant 0 : i32
    return %arg0, %c0_i32, %c0_i32_0 : i32, i32, i32
  }
  func.func @transform_2(%arg0: i32) -> (i32, i32) {
    %c0_i32 = arith.constant 0 : i32
    %c0_i32_0 = arith.constant 0 : i32
    return %arg0, %c0_i32 : i32, i32
  }
  func.func @transform_3(%arg0: i32) -> (i32, i32) {
    %c0_i32 = arith.constant 0 : i32
    %c0_i32_0 = arith.constant 0 : i32
    %c0_i32_1 = arith.constant 0 : i32
    return %c0_i32, %c0_i32_0 : i32, i32
  }
  func.func @transform_4(%arg0: i32) -> (i32, i32) {
    %c0_i32 = arith.constant 0 : i32
    %c0_i32_0 = arith.constant 0 : i32
    %c0_i32_1 = arith.constant 0 : i32
    return %c0_i32, %c0_i32_0 : i32, i32
  }
  func.func @transform_5(%arg0: i32) -> (i32, i32) {
    %c0_i32 = arith.constant 0 : i32
    %c0_i32_0 = arith.constant 0 : i32
    %c0_i32_1 = arith.constant 0 : i32
    return %c0_i32, %c0_i32_0 : i32, i32
  }
  func.func @transform_6(%arg0: i32) -> (i32, i32) {
    %c0_i32 = arith.constant 0 : i32
    %c0_i32_0 = arith.constant 0 : i32
    %c0_i32_1 = arith.constant 0 : i32
    return %c0_i32, %c0_i32_0 : i32, i32
  }
  func.func @transform_7(%arg0: i32) -> (i32, i32) {
    %c0_i32 = arith.constant 0 : i32
    %c0_i32_0 = arith.constant 0 : i32
    return %arg0, %c0_i32 : i32, i32
  }
  func.func @transform_8(%arg0: i32) -> (i32, i32) {
    %c0_i32 = arith.constant 0 : i32
    %c0_i32_0 = arith.constant 0 : i32
    return %arg0, %c0_i32 : i32, i32
  }
}

</mosaic_0001>

<llo_original>
// kernel: tpu_custom_call.1
$region0: #{tpu_custom_call.1}
  #allocation0 [shape = 'u32[]', space=smem, size = 0x4, offset = 0x4, fixed_abs, tag = 'smem constant byte address 0x4 - core index']
  #allocation1 [shape = 'u32[144,128]{1,0:T(1,128)}', space=vmem, size = 0x12000, scoped, tag = 'internal scratch']
  %s0 = inlined_call_operand.hbm [shape: f32[2,32], index: 0, kind: input, shape index: {}]
  %s1 = inlined_call_operand.hbm [shape: f32[2,8,32], index: 1, kind: input, shape index: {}]
  %s2 = inlined_call_operand.vmem [shape: f32[2,8], index: 2, kind: input, shape index: {}]
  %s3 = inlined_call_operand.hbm [shape: f32[32,32], index: 3, kind: input, shape index: {}]
  %s4 = inlined_call_operand.vmem [shape: f32[1,32], index: 4, kind: input, shape index: {}]
  %s5 = inlined_call_operand.hbm [shape: f32[32,32], index: 5, kind: input, shape index: {}]
  %s6 = inlined_call_operand.vmem [shape: f32[1,32], index: 6, kind: input, shape index: {}]
  %s7 = inlined_call_operand.hbm [shape: f32[2,32], index: 7, kind: output, shape index: {0}]
  %s8 = inlined_call_operand.hbm [shape: f32[2,8], index: 8, kind: output, shape index: {1}]
  %9 = xla_tuple %s7, %s8
  %s10 = sld [smem:[#allocation0]]
  $region62: #{tpu_custom_call.1} parent=0
    _
  %s12 = ssub.s32 1, %s10
  %s13 = scalar_select 0, %s12, %s10
  $region1: #{tpu_custom_call.1} parent=0
    #allocation2 [shape = 'u8[1024]{0}', space=vmem, size = 0x400, scoped, tag = 'input window, operand 0, single buffered']
    #allocation3 [shape = 's32[1]{0}', space=sflag, size = 0x4, scoped, tag = 'scoped memory for tpu_custom_call.1']
    #allocation4 [shape = 's32[1]{0}', space=sflag, size = 0x4, scoped, tag = 'scoped memory for tpu_custom_call.1']
    #allocation5 [shape = 'u8[8192]{0}', space=vmem, size = 0x2000, scoped, tag = 'input window, operand 1, single buffered']
    #allocation6 [shape = 's32[1]{0}', space=sflag, size = 0x4, scoped, tag = 'scoped memory for tpu_custom_call.1']
    #allocation7 [shape = 'u8[16384]{0}', space=vmem, size = 0x4000, scoped, tag = 'input window, operand 3, single buffered']
    #allocation8 [shape = 'u8[16384]{0}', space=vmem, size = 0x4000, scoped, tag = 'input window, operand 5, single buffered']
    #allocation9 [shape = 's32[1]{0}', space=sflag, size = 0x4, scoped, tag = 'scoped memory for tpu_custom_call.1']
    #allocation10 [shape = 'u8[1024]{0}', space=vmem, size = 0x400, scoped, tag = 'output window, operand 0, single buffered']
    #allocation11 [shape = 'u8[1024]{0}', space=vmem, size = 0x400, scoped, tag = 'output window, operand 1, single buffered']
    #allocation12 [shape = 's32[1]{0}', space=sflag, size = 0x4, scoped, tag = 'scoped memory for tpu_custom_call.1']
    %14 = vsyncpa [#allocation3], 0
    %15 = vsyncpa [#allocation6], 0
    %16 = vsyncpa [#allocation9], 0
    %17 = vsyncpa [#allocation4], 0
    %18 = vsyncpa [#allocation12], 0
    // Predicated region
    $region2: #{tpu_custom_call.1} parent=1 // pred_check
      _
    $region3: #{tpu_custom_call.1} parent=1 // pred_check_branch
      %20 = sbr.rel (0) target = $region5
    $region4: #{tpu_custom_call.1} parent=1 // pred_region
      %s22 = ssub.s32 32, 32
      %23 = vsyncadd [#allocation3], %s22
      %s25 = sshll.u32 [#allocation2], 4
      %s26 = int_to_ptr.vmem [resolvable:$true] %s25
      %28 = dma.hbm_to_vmem [thread:$0]  %s0, 32, %s26, [#allocation3]
    $region5: #{tpu_custom_call.1} parent=1 // pred_fallthru
      _
    // Predicated region
    $region6: #{tpu_custom_call.1} parent=1 // pred_check
      _
    $region7: #{tpu_custom_call.1} parent=1 // pred_check_branch
      %30 = sbr.rel (0) target = $region9
    $region8: #{tpu_custom_call.1} parent=1 // pred_region
      %s32 = ssub.s32 256, 256
      %33 = vsyncadd [#allocation6], %s32
      %s34 = sshll.u32 [#allocation5], 4
      %s35 = int_to_ptr.vmem [resolvable:$true] %s34
      %40 = dma.hbm_to_vmem [thread:$0]  %s1, 256, %s35, [#allocation6], 128, 128, 8
    $region9: #{tpu_custom_call.1} parent=1 // pred_fallthru
      _
    // Predicated region
    $region10: #{tpu_custom_call.1} parent=1 // pred_check
      _
    $region11: #{tpu_custom_call.1} parent=1 // pred_check_branch
      %42 = sbr.rel (0) target = $region13
    $region12: #{tpu_custom_call.1} parent=1 // pred_region
      _
    $region13: #{tpu_custom_call.1} parent=1 // pred_fallthru
      _
    // Predicated region
    $region14: #{tpu_custom_call.1} parent=1 // pred_check
      _
    $region15: #{tpu_custom_call.1} parent=1 // pred_check_branch
      %44 = sbr.rel (0) target = $region17
    $region16: #{tpu_custom_call.1} parent=1 // pred_region
      %s46 = ssub.s32 512, 512
      %47 = vsyncadd [#allocation6], %s46
      %s48 = sshll.u32 [#allocation7], 4
      %s49 = int_to_ptr.vmem [resolvable:$true] %s48
      %54 = dma.hbm_to_vmem [thread:$0]  %s3, 512, %s49, [#allocation6], 128, 128, 8
    $region17: #{tpu_custom_call.1} parent=1 // pred_fallthru
      _
    // Predicated region
    $region18: #{tpu_custom_call.1} parent=1 // pred_check
      _
    $region19: #{tpu_custom_call.1} parent=1 // pred_check_branch
      %56 = sbr.rel (0) target = $region21
    $region20: #{tpu_custom_call.1} parent=1 // pred_region
      _
    $region21: #{tpu_custom_call.1} parent=1 // pred_fallthru
      _
    // Predicated region
    $region22: #{tpu_custom_call.1} parent=1 // pred_check
      _
    $region23: #{tpu_custom_call.1} parent=1 // pred_check_branch
      %58 = sbr.rel (0) target = $region25
    $region24: #{tpu_custom_call.1} parent=1 // pred_region
      %s60 = ssub.s32 512, 512
      %61 = vsyncadd [#allocation9], %s60
      %s62 = sshll.u32 [#allocation8], 4
      %s63 = int_to_ptr.vmem [resolvable:$true] %s62
      %68 = dma.hbm_to_vmem [thread:$0]  %s5, 512, %s63, [#allocation9], 128, 128, 8
    $region25: #{tpu_custom_call.1} parent=1 // pred_fallthru
      _
    // Predicated region
    $region26: #{tpu_custom_call.1} parent=1 // pred_check
      _
    $region27: #{tpu_custom_call.1} parent=1 // pred_check_branch
      %70 = sbr.rel (0) target = $region29
    $region28: #{tpu_custom_call.1} parent=1 // pred_region
      _
    $region29: #{tpu_custom_call.1} parent=1 // pred_fallthru
      _
    // Predicated region
    $region30: #{tpu_custom_call.1} parent=1 // pred_check
      _
    $region31: #{tpu_custom_call.1} parent=1 // pred_check_branch
      %72 = sbr.rel (0) target = $region33
    $region32: #{tpu_custom_call.1} parent=1 // pred_region
      %73 = dma.done [#allocation3], 32
    $region33: #{tpu_custom_call.1} parent=1 // pred_fallthru
      _
    // Predicated region
    $region34: #{tpu_custom_call.1} parent=1 // pred_check
      _
    $region35: #{tpu_custom_call.1} parent=1 // pred_check_branch
      %75 = sbr.rel (0) target = $region37
    $region36: #{tpu_custom_call.1} parent=1 // pred_region
      %76 = dma.done [#allocation6], 256
    $region37: #{tpu_custom_call.1} parent=1 // pred_fallthru
      _
    // Predicated region
    $region38: #{tpu_custom_call.1} parent=1 // pred_check
      _
    $region39: #{tpu_custom_call.1} parent=1 // pred_check_branch
      %78 = sbr.rel (0) target = $region41
    $region40: #{tpu_custom_call.1} parent=1 // pred_region
      %79 = dma.done [#allocation6], 512
    $region41: #{tpu_custom_call.1} parent=1 // pred_fallthru
      _
    // Predicated region
    $region42: #{tpu_custom_call.1} parent=1 // pred_check
      _
    $region43: #{tpu_custom_call.1} parent=1 // pred_check_branch
      %81 = sbr.rel (0) target = $region45
    $region44: #{tpu_custom_call.1} parent=1 // pred_region
      %82 = dma.done [#allocation9], 512
    $region45: #{tpu_custom_call.1} parent=1 // pred_fallthru
      _
    %v83 = vld [vmem:[#allocation5] sm:$0xff]
    %v84 = vld [vmem:[#allocation5 + $0x8] sm:$0xff]
    %v85 = vld [vmem:[#allocation7] sm:$0xff]
    %v86 = vld [vmem:[#allocation7 + $0x8] sm:$0xff]
    %v87 = vld [vmem:[#allocation7 + $0x10] sm:$0xff]
    %v88 = vld [vmem:[#allocation7 + $0x18] sm:$0xff]
    %v89 = vld [vmem:[%s4] sm:$0x1]
    %v91 = vlaneseq
    %v92 = vshrl.u32 %v91, 7
    %v93 = vsub.s32 0, %v92
    %v94 = vrot.slane %v89, %v93
    %vm96 = vcmask 261120
    %v98 = vsel %vm96, %v83, 0
    %v101 = vsel %vm96, %v84, 0
    %103 = vmatprep.subr.mxu0 0.0
    %104 = vmatpush1.msra.mxu0 0.0
    %105 = vmatprep.subr.mxu0 0.0
    %106 = vmatpush1.msra.mxu0 0.0
    %107 = vmatprep.subr.mxu0 0.0
    %108 = vmatpush1.msra.mxu0 0.0
    %109 = vmatprep.subr.mxu0 0.0
    %110 = vmatpush1.msra.mxu0 0.0
    %111 = vmatprep.subr.mxu0 0.0
    %112 = vmatpush1.msra.mxu0 0.0
    %113 = vmatprep.subr.mxu0 0.0
    %114 = vmatpush1.msra.mxu0 0.0
    %115 = vmatprep.subr.mxu0 0.0
    %116 = vmatpush1.msra.mxu0 0.0
    %117 = vmatprep.subr.mxu0 0.0
    %118 = vmatpush1.msra.mxu0 0.0
    %119 = vmatprep.subr.mxu0 0.0
    %120 = vmatpush1.msra.mxu0 0.0
    %121 = vmatprep.subr.mxu0 0.0
    %122 = vmatpush1.msra.mxu0 0.0
    %123 = vmatprep.subr.mxu0 0.0
    %124 = vmatpush1.msra.mxu0 0.0
    %125 = vmatprep.subr.mxu0 0.0
    %126 = vmatpush1.msra.mxu0 0.0
    %127 = vmatprep.subr.mxu0 0.0
    %128 = vmatpush1.msra.mxu0 %v88
    %129 = vmatprep.subr.mxu0 0.0
    %130 = vmatpush1.msra.mxu0 %v87
    %131 = vmatprep.subr.mxu0 0.0
    %132 = vmatpush1.msra.mxu0 %v86
    %133 = vmatprep.subr.mxu0 0.0
    %134 = vmatpush1.msra.mxu0 %v85
    %135 = vmatprep.subr.mxu0 0.0
    %136 = vmatpush2.msra.mxu0 0.0
    %137 = vmatprep.subr.mxu0 0.0
    %138 = vmatpush2.msra.mxu0 0.0
    %139 = vmatprep.subr.mxu0 0.0
    %140 = vmatpush2.msra.mxu0 0.0
    %141 = vmatprep.subr.mxu0 0.0
    %142 = vmatpush2.msra.mxu0 0.0
    %143 = vmatprep.subr.mxu0 0.0
    %144 = vmatpush2.msra.mxu0 0.0
    %145 = vmatprep.subr.mxu0 0.0
    %146 = vmatpush2.msra.mxu0 0.0
    %147 = vmatprep.subr.mxu0 0.0
    %148 = vmatpush2.msra.mxu0 0.0
    %149 = vmatprep.subr.mxu0 0.0
    %150 = vmatpush2.msra.mxu0 0.0
    %151 = vmatprep.subr.mxu0 0.0
    %152 = vmatpush2.msra.mxu0 0.0
    %153 = vmatprep.subr.mxu0 0.0
    %154 = vmatpush2.msra.mxu0 0.0
    %155 = vmatprep.subr.mxu0 0.0
    %156 = vmatpush2.msra.mxu0 0.0
    %157 = vmatprep.subr.mxu0 0.0
    %158 = vmatpush2.msra.mxu0 0.0
    %159 = vmatprep.subr.mxu0 0.0
    %160 = vmatpush2.msra.mxu0 0.0
    %161 = vmatprep.subr.mxu0 0.0
    %162 = vmatpush2.msra.mxu0 0.0
    %163 = vmatprep.subr.mxu0 0.0
    %164 = vmatpush2.msra.mxu0 0.0
    %165 = vmatprep.subr.mxu0 0.0
    %166 = vmatpush2.msra.mxu0 0.0
    %167 = vmatprep.mubr.f32.mxu0 0.0
    %168 = vmatmul.mubr.f32.gmra.mxu0 %v98
    %v169 = vpop.f32.mrf.mxu0
    %v170 = vadd.f32 %v94, %v169
    %v171 = vpop.f32.mrf.mxu0
    %172 = vmatprep.mubr.f32.mxu0 0.0
    %173 = vmatmul.mubr.f32.gmra.mxu0 %v101
    %v174 = vpop.f32.mrf.mxu0
    %v175 = vadd.f32 %v94, %v174
    %v176 = vpop.f32.mrf.mxu0
    %177 = vdwg.mxu0
    %v178 = vld [vmem:[#allocation2] sm:$0x3]
    %v179 = vld [vmem:[#allocation8] sm:$0xff]
    %v180 = vld [vmem:[#allocation8 + $0x8] sm:$0xff]
    %v181 = vld [vmem:[#allocation8 + $0x10] sm:$0xff]
    %v182 = vld [vmem:[#allocation8 + $0x18] sm:$0xff]
    %v184 = vsel %vm96, %v178, 0
    %186 = vmatprep.subr.mxu0 0.0
    %187 = vmatpush1.msra.mxu0 0.0
    %188 = vmatprep.subr.mxu0 0.0
    %189 = vmatpush1.msra.mxu0 0.0
    %190 = vmatprep.subr.mxu0 0.0
    %191 = vmatpush1.msra.mxu0 0.0
    %192 = vmatprep.subr.mxu0 0.0
    %193 = vmatpush1.msra.mxu0 0.0
    %194 = vmatprep.subr.mxu0 0.0
    %195 = vmatpush1.msra.mxu0 0.0
    %196 = vmatprep.subr.mxu0 0.0
    %197 = vmatpush1.msra.mxu0 0.0
    %198 = vmatprep.subr.mxu0 0.0
    %199 = vmatpush1.msra.mxu0 0.0
    %200 = vmatprep.subr.mxu0 0.0
    %201 = vmatpush1.msra.mxu0 0.0
    %202 = vmatprep.subr.mxu0 0.0
    %203 = vmatpush1.msra.mxu0 0.0
    %204 = vmatprep.subr.mxu0 0.0
    %205 = vmatpush1.msra.mxu0 0.0
    %206 = vmatprep.subr.mxu0 0.0
    %207 = vmatpush1.msra.mxu0 0.0
    %208 = vmatprep.subr.mxu0 0.0
    %209 = vmatpush1.msra.mxu0 0.0
    %210 = vmatprep.subr.mxu0 0.0
    %211 = vmatpush1.msra.mxu0 %v182
    %212 = vmatprep.subr.mxu0 0.0
    %213 = vmatpush1.msra.mxu0 %v181
    %214 = vmatprep.subr.mxu0 0.0
    %215 = vmatpush1.msra.mxu0 %v180
    %216 = vmatprep.subr.mxu0 0.0
    %217 = vmatpush1.msra.mxu0 %v179
    %218 = vmatprep.subr.mxu0 0.0
    %219 = vmatpush2.msra.mxu0 0.0
    %220 = vmatprep.subr.mxu0 0.0
    %221 = vmatpush2.msra.mxu0 0.0
    %222 = vmatprep.subr.mxu0 0.0
    %223 = vmatpush2.msra.mxu0 0.0
    %224 = vmatprep.subr.mxu0 0.0
    %225 = vmatpush2.msra.mxu0 0.0
    %226 = vmatprep.subr.mxu0 0.0
    %227 = vmatpush2.msra.mxu0 0.0
    %228 = vmatprep.subr.mxu0 0.0
    %229 = vmatpush2.msra.mxu0 0.0
    %230 = vmatprep.subr.mxu0 0.0
    %231 = vmatpush2.msra.mxu0 0.0
    %232 = vmatprep.subr.mxu0 0.0
    %233 = vmatpush2.msra.mxu0 0.0
    %234 = vmatprep.subr.mxu0 0.0
    %235 = vmatpush2.msra.mxu0 0.0
    %236 = vmatprep.subr.mxu0 0.0
    %237 = vmatpush2.msra.mxu0 0.0
    %238 = vmatprep.subr.mxu0 0.0
    %239 = vmatpush2.msra.mxu0 0.0
    %240 = vmatprep.subr.mxu0 0.0
    %241 = vmatpush2.msra.mxu0 0.0
    %242 = vmatprep.subr.mxu0 0.0
    %243 = vmatpush2.msra.mxu0 0.0
    %244 = vmatprep.subr.mxu0 0.0
    %245 = vmatpush2.msra.mxu0 0.0
    %246 = vmatprep.subr.mxu0 0.0
    %247 = vmatpush2.msra.mxu0 0.0
    %248 = vmatprep.subr.mxu0 0.0
    %249 = vmatpush2.msra.mxu0 0.0
    %250 = vmatprep.mubr.f32.mxu0 0.0
    %251 = vmatmul.mubr.f32.gmra.mxu0 %v184
    %v252 = vpop.f32.mrf.mxu0
    %v253 = vadd.f32 0.0, %v252
    %v254 = vpop.f32.mrf.mxu0
    %255 = vdwg.mxu0
    %v258 = vunpack.c.l.s4 1966171168
    %v259 = vunpack.c.0.s8 %v258
    %v260 = vlaneseq
    %v261 = vshrl.u32 %v260, 7
    %v262 = vsub.s32 %v259, %v261
    %v263 = vrot.slane %v253, %v262
    %v264 = vcombine.high %v263, %v263
    %v266 = vunpack.c.l.s4 1966171168
    %v267 = vunpack.c.0.s8 %v266
    %v268 = vlaneseq
    %v269 = vshrl.u32 %v268, 7
    %v270 = vsub.s32 %v267, %v269
    %v271 = vrot.slane %v263, %v270
    %v273 = vunpack.c.l.s4 1966171168
    %v274 = vunpack.c.0.s8 %v273
    %v275 = vlaneseq
    %v276 = vshrl.u32 %v275, 7
    %v277 = vsub.s32 %v274, %v276
    %v278 = vrot.slane %v264, %v277
    %v279 = vlaneseq
    %v280 = vshrl.u32 %v279, 7
    %v281 = vsub.s32 0, %v280
    %v282 = vrot.slane %v271, %v281
    %v283 = vlaneseq
    %v284 = vshrl.u32 %v283, 7
    %v285 = vsub.s32 0, %v284
    %v286 = vrot.slane %v278, %v285
    %v289 = vadd.f32 %v170, %v282
    %v290 = vadd.f32 %v175, %v286
    %v291 = vtanh.pop %v289
    %v292 = vtanh.pop %v290
    %v293 = vld [vmem:[%s6] sm:$0x1]
    %v295 = vlaneseq
    %v296 = vshrl.u32 %v295, 7
    %v297 = vsub.s32 0, %v296
    %v298 = vrot.slane %v293, %v297
    %v300 = vmul.f32 %v291, %v298
    %v301 = vmul.f32 %v292, %v298
    %v302 = vsel %vm96, %v300, 0.0
    %303 = vadd.xlane.f32.xlu0 %v302
    %v304 = vpop.xlane.xlu0 %303
    %v305 = vsel %vm96, %v301, 0.0
    %306 = vadd.xlane.f32.xlu0 %v305
    %v307 = vpop.xlane.xlu0 %306
    %v308 = vld [vmem:[%s2] sm:$0x3]
    %v311 = vlaneseq
    %v312 = vand.u32 %v311, 127
    %v313 = vlaneseq
    %v314 = vshrl.u32 %v313, 7
    %v315 = vsub.s32 %v312, %v314
    %v316 = vrot.slane %v304, %v315
    %v317 = vlaneseq
    %v318 = vshrl.u32 %v317, 7
    %v319 = vsub.s32 %v312, %v318
    %v320 = vrot.slane %v307, %v319
    %vm321 = vcmask 1041409
    %v322 = vsel %vm321, %v320, %v316
    %vm324 = vcmask 58368
    %v325 = vsel %vm324, %v322, -inf
    %326 = vmax.xlane.f32.xlu0 %v325
    %v327 = vpop.xlane.xlu0 %326
    %v329 = vlaneseq
    %v330 = vshrl.u32 %v329, 7
    %v331 = vsub.s32 0, %v330
    %v332 = vrot.slane %v327, %v331
    %v333 = vlaneseq
    %v334 = vshrl.u32 %v333, 7
    %v335 = vsub.s32 1, %v334
    %v336 = vrot.slane %v327, %v335
    %v339 = vsub.f32 %v304, %v332
    %v340 = vsub.f32 %v307, %v336
    %v341 = vmul.f32 %v339, 1.442695
    %v342 = vpow.pop %v341
    %v343 = vmul.f32 %v340, 1.442695
    %v344 = vpow.pop %v343
    %v346 = vlaneseq
    %v347 = vshrl.u32 %v346, 7
    %v348 = vsub.s32 0, %v347
    %v349 = vrot.slane %v308, %v348
    %351 = vbcast.lane.b32.xlu0 %v349, 256
    %v352 = vpop.permute.xlu0 %351
    %v353 = vlaneseq
    %v354 = vshrl.u32 %v353, 7
    %v355 = vsub.s32 1, %v354
    %v356 = vrot.slane %v308, %v355
    %358 = vbcast.lane.b32.xlu0 %v356, 256
    %v359 = vpop.permute.xlu0 %358
    %v362 = vmul.f32 %v342, %v352
    %v363 = vmul.f32 %v344, %v359
    %366 = vset.pattern.permute.xlu0 0
    %367 = vperm.xlu0 %366, %v362
    %v368 = vpop.permute.xlu0 %367
    %369 = vset.pattern.permute.xlu0 0
    %370 = vperm.xlu0 %369, %v363
    %v371 = vpop.permute.xlu0 %370
    %v372 = vlaneseq
    %v373 = vshrl.u32 %v372, 7
    %v374 = vsub.s32 %v312, %v373
    %v375 = vrot.slane %v368, %v374
    %v376 = vlaneseq
    %v377 = vshrl.u32 %v376, 7
    %v378 = vsub.s32 %v312, %v377
    %v379 = vrot.slane %v371, %v378
    %v380 = vsel %vm321, %v379, %v375
    %v382 = vsel %vm324, %v380, 0.0
    %383 = vadd.xlane.f32.xlu0 %v382
    %v384 = vpop.xlane.xlu0 %383
    %v386 = vlaneseq
    %v387 = vshrl.u32 %v386, 7
    %v388 = vsub.s32 0, %v387
    %v389 = vrot.slane %v384, %v388
    %v390 = vlaneseq
    %v391 = vshrl.u32 %v390, 7
    %v392 = vsub.s32 1, %v391
    %v393 = vrot.slane %v384, %v392
    %v396 = vrcp.pop %v389
    %v397 = vmul.f32 %v362, %v396
    %v398 = vrcp.pop %v393
    %v399 = vmul.f32 %v363, %v398
    %401 = vset.pattern.permute.xlu0 0
    %402 = vperm.xlu0 %401, %v397
    %v403 = vpop.permute.xlu0 %402
    %406 = vset.pattern.permute.xlu0 0
    %407 = vperm.xlu0 %406, %v399
    %v408 = vpop.permute.xlu0 %407
    %v410 = vmul.f32 %v403, %v83
    %v411 = vmul.f32 %v408, %v84
    %v412 = vsel %vm96, %v410, 0.0
    %v413 = vrot.slane %v412, 4
    %v414 = vadd.f32 %v412, %v413
    %v415 = vrot.slane %v414, 2
    %v416 = vadd.f32 %v414, %v415
    %v417 = vrot.slane %v416, 1
    %v418 = vadd.f32 %v416, %v417
    %v419 = vsel %vm96, %v411, 0.0
    %v420 = vrot.slane %v419, 4
    %v421 = vadd.f32 %v419, %v420
    %v422 = vrot.slane %v421, 2
    %v423 = vadd.f32 %v421, %v422
    %v424 = vrot.slane %v423, 1
    %v425 = vadd.f32 %v423, %v424
    %v428 = vsel %vm321, %v425, %v418
    %vm430 = vcmask 254976
    %431 = vst.msk [vmem:[#allocation10] sm:$0x3] %vm430, %v428
    %v432 = vlaneseq
    %v433 = vshrl.u32 %v432, 7
    %v434 = vsub.s32 %v312, %v433
    %v435 = vrot.slane %v403, %v434
    %v436 = vlaneseq
    %v437 = vshrl.u32 %v436, 7
    %v438 = vsub.s32 %v312, %v437
    %v439 = vrot.slane %v408, %v438
    %v440 = vsel %vm321, %v439, %v435
    %442 = vst.msk [vmem:[#allocation11] sm:$0x3] %vm324, %v440
    // Predicated region
    $region46: #{tpu_custom_call.1} parent=1 // pred_check
      _
    $region47: #{tpu_custom_call.1} parent=1 // pred_check_branch
      %444 = sbr.rel (0) target = $region49
    $region48: #{tpu_custom_call.1} parent=1 // pred_region
      %s446 = ssub.s32 32, 32
      %447 = vsyncadd [#allocation4], %s446
      %s449 = sshll.u32 [#allocation10], 4
      %s450 = int_to_ptr.vmem [resolvable:$true] %s449
      %452 = dma.vmem_to_hbm [thread:$0]  %s450, 32, %s7, [#allocation4]
    $region49: #{tpu_custom_call.1} parent=1 // pred_fallthru
      _
    // Predicated region
    $region50: #{tpu_custom_call.1} parent=1 // pred_check
      _
    $region51: #{tpu_custom_call.1} parent=1 // pred_check_branch
      %454 = sbr.rel (0) target = $region53
    $region52: #{tpu_custom_call.1} parent=1 // pred_region
      %s456 = ssub.s32 32, 32
      %457 = vsyncadd [#allocation12], %s456
      %s459 = sshll.u32 [#allocation11], 4
      %s460 = int_to_ptr.vmem [resolvable:$true] %s459
      %462 = dma.vmem_to_hbm [thread:$0]  %s460, 32, %s8, [#allocation12]
    $region53: #{tpu_custom_call.1} parent=1 // pred_fallthru
      _
    // Predicated region
    $region54: #{tpu_custom_call.1} parent=1 // pred_check
      _
    $region55: #{tpu_custom_call.1} parent=1 // pred_check_branch
      %464 = sbr.rel (0) target = $region57
    $region56: #{tpu_custom_call.1} parent=1 // pred_region
      %465 = dma.done [#allocation4], 32
    $region57: #{tpu_custom_call.1} parent=1 // pred_fallthru
      _
    // Predicated region
    $region58: #{tpu_custom_call.1} parent=1 // pred_check
      _
    $region59: #{tpu_custom_call.1} parent=1 // pred_check_branch
      %467 = sbr.rel (0) target = $region61
    $region60: #{tpu_custom_call.1} parent=1 // pred_region
      %468 = dma.done [#allocation12], 32
    $region61: #{tpu_custom_call.1} parent=1 // pred_fallthru
      _
    %469 = vsyncpa [#allocation3], 1
    %470 = vsyncpa [#allocation6], 1
    %471 = vsyncpa [#allocation9], 1
    %472 = vsyncpa [#allocation4], 1
    %473 = vsyncpa [#allocation12], 1

</llo_original>
